<compile_context>
chip_gen: v5e
topology: v5e:2x2
jax: 0.10.0
libtpu: 0.0.40
codegen_flags: <defaults>
</compile_context>

<pallas_src>
import functools

import jax
import jax.numpy as jnp
from jax.experimental import pallas as pl
from jax.experimental.pallas import tpu as pltpu


def ode_kernel(x_ref, o_ref, *, reverse):
    # x_ref / o_ref: [6, TB] blocks in VMEM.
    # Rows (sublane axis): 0=z0 (prey), 1=z1 (predator), 2=a, 3=b, 4=c, 5=d.
    # Columns (lane axis): batch — full 128-lane vreg width for large B.
    z0 = x_ref[0:1, :]
    z1 = x_ref[1:2, :]
    a = x_ref[2:3, :]
    b = x_ref[3:4, :]
    c = x_ref[4:5, :]
    d = x_ref[5:6, :]

    zz = z0 * z1  # shared subexpression, computed once

    if reverse:
        # Sign folded in at trace time: -(a*z0 - b*z0*z1), -(d*z0*z1 - c*z1).
        dz0 = b * zz - a * z0
        dz1 = c * z1 - d * zz
    else:
        dz0 = a * z0 - b * zz
        dz1 = d * zz - c * z1

    o_ref[0:1, :] = dz0.astype(o_ref.dtype)
    o_ref[1:2, :] = dz1.astype(o_ref.dtype)
    # Parameter rows of the output are literal zeros (no -0.0 in reverse mode).
    o_ref[2:6, :] = jnp.zeros((4,) + o_ref.shape[1:], o_ref.dtype)


def _pick_batch_tile(B, target):
    """Largest lane tile that divides B; a multiple of 128 when B is."""
    if B <= target or B % 128 != 0:
        return B  # single block covering the full array extent (always legal)
    tb = max((target // 128) * 128, 128)
    while B % tb != 0:
        tb -= 128
    return tb


@functools.partial(jax.jit, static_argnames=("reverse", "block_b"))
def ode_forward(t, input_t, *, reverse=False, block_b=65536):
    """Pallas equivalent of ODE.forward(t, input_t). `t` is unused (as in torch)."""
    del t
    B, F = input_t.shape
    assert F == 6, "input_t must be [B, 6] = [z0, z1, a, b, c, d]"

    # Lane-dense layout: batch on the lane (last) axis -> [6, B].
    x_t = input_t.T

    TB = _pick_batch_tile(B, block_b)
    grid = (B // TB,)

    kernel = functools.partial(ode_kernel, reverse=reverse)
    out_t = pl.pallas_call(
        kernel,
        out_shape=jax.ShapeDtypeStruct((F, B), input_t.dtype),
        grid=grid,
        in_specs=[pl.BlockSpec((F, TB), lambda i: (0, i))],
        out_specs=pl.BlockSpec((F, TB), lambda i: (0, i)),
        compiler_params=pltpu.CompilerParams(
            dimension_semantics=("parallel",)),
    )(x_t)

    # Back to the module's [B, 6] layout (fused into the jit as a transpose).
    return out_t.T


def ode_forward_ref(t, input_t, *, reverse=False):
    """Pure-JAX reference matching the PyTorch forward semantics."""
    del t
    z0 = input_t[:, 0]
    z1 = input_t[:, 1]
    a, b, c, d = (input_t[:, 2], input_t[:, 3], input_t[:, 4], input_t[:, 5])
    dz0 = a * z0 - b * z0 * z1
    dz1 = d * z0 * z1 - c * z1
    sign = -1.0 if reverse else 1.0
    dzdt = jnp.stack([dz0, dz1], axis=1)
    zeros = jnp.zeros_like(input_t[:, 2:])
    return sign * jnp.concatenate([dzdt, zeros], axis=1)


if __name__ == "__main__":
    key = jax.random.PRNGKey(0)
    k_small, k_big = jax.random.split(key)
    t = jnp.float32(0.0)

    # Small batch matching the module's [B, 6] interface (single-block path).
    B = 8
    input_t = jax.random.uniform(k_small, (B, 6), dtype=jnp.float32,
                                 minval=0.1, maxval=2.0)

    out_fwd = jax.block_until_ready(ode_forward(t, input_t, reverse=False))
    out_rev = jax.block_until_ready(ode_forward(t, input_t, reverse=True))
    ref_fwd = ode_forward_ref(t, input_t, reverse=False)
    ref_rev = ode_forward_ref(t, input_t, reverse=True)

    assert out_fwd.shape == (B, 6) and out_fwd.dtype == jnp.float32
    assert jnp.allclose(out_fwd, ref_fwd, atol=1e-6, rtol=1e-6)
    assert jnp.allclose(out_rev, ref_rev, atol=1e-6, rtol=1e-6)

    # Larger lane-aligned batch exercising the tiled, megacore-parallel path.
    B2 = 512
    input2 = jax.random.uniform(k_big, (B2, 6), dtype=jnp.float32,
                                minval=0.1, maxval=2.0)
    out2 = jax.block_until_ready(
        ode_forward(t, input2, reverse=False, block_b=128))
    ref2 = ode_forward_ref(t, input2, reverse=False)
    assert jnp.allclose(out2, ref2, atol=1e-6, rtol=1e-6)

    print("KERNEL_OK")
</pallas_src>

<mosaic_0001>
module attributes {stable_mosaic.version = 11 : i64} {
  func.func @ode_kernel(%arg0: i32, %arg1: memref<6x8xf32, #tpu.memory_space<vmem>>, %arg2: memref<6x8xf32, #tpu.memory_space<vmem>>) attributes {dimension_semantics = [#tpu.dimension_semantics<parallel>], iteration_bounds = array<i64: 1>, scalar_prefetch = 0 : i64, scratch_operands = 0 : i64, tpu.core_type = #tpu.core_type<tc>, window_params = [{transform_indices = @transform_0, window_bounds = array<i64: 6, 8>}, {transform_indices = @transform_1, window_bounds = array<i64: 6, 8>}]} {
    %c0 = arith.constant 0 : index
    %c0_0 = arith.constant 0 : index
    %0 = vector.load %arg1[%c0, %c0_0] : memref<6x8xf32, #tpu.memory_space<vmem>>, vector<1x8xf32>
    %c1 = arith.constant 1 : index
    %c0_1 = arith.constant 0 : index
    %1 = vector.load %arg1[%c1, %c0_1] : memref<6x8xf32, #tpu.memory_space<vmem>>, vector<1x8xf32>
    %c2 = arith.constant 2 : index
    %c0_2 = arith.constant 0 : index
    %2 = vector.load %arg1[%c2, %c0_2] : memref<6x8xf32, #tpu.memory_space<vmem>>, vector<1x8xf32>
    %c3 = arith.constant 3 : index
    %c0_3 = arith.constant 0 : index
    %3 = vector.load %arg1[%c3, %c0_3] : memref<6x8xf32, #tpu.memory_space<vmem>>, vector<1x8xf32>
    %c4 = arith.constant 4 : index
    %c0_4 = arith.constant 0 : index
    %4 = vector.load %arg1[%c4, %c0_4] : memref<6x8xf32, #tpu.memory_space<vmem>>, vector<1x8xf32>
    %c5 = arith.constant 5 : index
    %c0_5 = arith.constant 0 : index
    %5 = vector.load %arg1[%c5, %c0_5] : memref<6x8xf32, #tpu.memory_space<vmem>>, vector<1x8xf32>
    %6 = arith.mulf %0, %1 : vector<1x8xf32>
    %7 = arith.mulf %2, %0 : vector<1x8xf32>
    %8 = arith.mulf %3, %6 : vector<1x8xf32>
    %9 = arith.subf %7, %8 : vector<1x8xf32>
    %10 = arith.mulf %5, %6 : vector<1x8xf32>
    %11 = arith.mulf %4, %1 : vector<1x8xf32>
    %12 = arith.subf %10, %11 : vector<1x8xf32>
    %c0_6 = arith.constant 0 : index
    %c0_7 = arith.constant 0 : index
    %13 = vector.load %arg2[%c0_6, %c0_7] : memref<6x8xf32, #tpu.memory_space<vmem>>, vector<1x8xf32>
    tpu.vector_store %arg2[%c0_6, %c0_7], %9 {strides = array<i32>} : memref<6x8xf32, #tpu.memory_space<vmem>>, vector<1x8xf32>,
    %c1_8 = arith.constant 1 : index
    %c0_9 = arith.constant 0 : index
    %14 = vector.load %arg2[%c1_8, %c0_9] : memref<6x8xf32, #tpu.memory_space<vmem>>, vector<1x8xf32>
    tpu.vector_store %arg2[%c1_8, %c0_9], %12 {strides = array<i32>} : memref<6x8xf32, #tpu.memory_space<vmem>>, vector<1x8xf32>,
    %cst = arith.constant 0.000000e+00 : f32
    %15 = vector.broadcast %cst : f32 to vector<4x8xf32>
    %c2_10 = arith.constant 2 : index
    %c0_11 = arith.constant 0 : index
    %16 = vector.load %arg2[%c2_10, %c0_11] : memref<6x8xf32, #tpu.memory_space<vmem>>, vector<4x8xf32>
    tpu.vector_store %arg2[%c2_10, %c0_11], %15 {strides = array<i32>} : memref<6x8xf32, #tpu.memory_space<vmem>>, vector<4x8xf32>,
    return
  }
  func.func @transform_0(%arg0: i32) -> (i32, i32) {
    %c0_i32 = arith.constant 0 : i32
    %c0_i32_0 = arith.constant 0 : i32
    return %c0_i32, %arg0 : i32, i32
  }
  func.func @transform_1(%arg0: i32) -> (i32, i32) {
    %c0_i32 = arith.constant 0 : i32
    %c0_i32_0 = arith.constant 0 : i32
    return %c0_i32, %arg0 : i32, i32
  }
}

</mosaic_0001>

<llo_original>
// kernel: ode_forward.1
$region0: #{ode_forward.1}
  #allocation0 [shape = 'u32[]', space=smem, size = 0x4, offset = 0x4, fixed_abs, tag = 'smem constant byte address 0x4 - core index']
  #allocation1 [shape = 'u32[72,128]{1,0:T(1,128)}', space=vmem, size = 0x9000, scoped, tag = 'internal scratch']
  %s0 = inlined_call_operand.vmem [shape: f32[6,8], index: 0, kind: input, shape index: {}]
  %s1 = inlined_call_operand.vmem [shape: f32[6,8], index: 1, kind: output, shape index: {}]
  %s2 = sld [smem:[#allocation0]]
  $region14: #{ode_forward.1} parent=0
    _
  %s4 = ssub.s32 1, %s2
  %s5 = scalar_select 0, %s4, %s2
  // Predicated region
  $region2: #{ode_forward.1} parent=0 // pred_check
    _
  $region3: #{ode_forward.1} parent=0 // pred_check_branch
    %7 = sbr.rel (0) target = $region5
  $region4: #{ode_forward.1} parent=0 // pred_region
    _
  $region5: #{ode_forward.1} parent=0 // pred_fallthru
    _
  %v8 = vld [vmem:[%s0] sm:$0x1]
  %v9 = vld [vmem:[%s0 + $0x1] sm:$0x1]
  %v10 = vld [vmem:[%s0 + $0x2] sm:$0x1]
  %v11 = vld [vmem:[%s0 + $0x3] sm:$0x1]
  %v12 = vld [vmem:[%s0 + $0x4] sm:$0x1]
  %v13 = vld [vmem:[%s0 + $0x5] sm:$0x1]
  %v14 = vmul.f32 %v8, %v9
  %v15 = vmul.f32 %v10, %v8
  %v16 = vmul.f32 %v11, %v14
  %v17 = vsub.f32 %v15, %v16
  %v18 = vmul.f32 %v13, %v14
  %v19 = vmul.f32 %v12, %v9
  %v20 = vsub.f32 %v18, %v19
  %vm21 = vcmask 57344
  %22 = vst.msk [vmem:[%s1] sm:$0x1] %vm21, %v17
  %23 = vst.msk [vmem:[%s1 + $0x1] sm:$0x1] %vm21, %v20
  %vm24 = vcmask 60416
  %25 = vst.msk [vmem:[%s1 + $0x2] sm:$0xf] %vm24, 0.0
  // Predicated region
  $region6: #{ode_forward.1} parent=0 // pred_check
    _
  $region7: #{ode_forward.1} parent=0 // pred_check_branch
    %27 = sbr.rel (0) target = $region9
  $region8: #{ode_forward.1} parent=0 // pred_region
    _
  $region9: #{ode_forward.1} parent=0 // pred_fallthru
    _
  // Predicated region
  $region10: #{ode_forward.1} parent=0 // pred_check
    _
  $region11: #{ode_forward.1} parent=0 // pred_check_branch
    %29 = sbr.rel (0) target = $region13
  $region12: #{ode_forward.1} parent=0 // pred_region
    _
  $region13: #{ode_forward.1} parent=0 // pred_fallthru
    _

</llo_original>
